<compile_context>
chip_gen: v7x
topology: tpu7x:2x2x1
jax: 0.10.0
libtpu: 0.0.40
codegen_flags: <defaults>
</compile_context>

<pallas_src>
import jax
import jax.numpy as jnp
from jax import lax
from jax.experimental import pallas as pl
from jax.experimental.pallas import tpu as pltpu


def _round_up(n, m):
    return (n + m - 1) // m * m


def task_head_kernel(x_ref, w1_ref, b1_ref, w2_ref, b2_ref, o_ref):
    # Linear1 on the MXU (f32 accumulation), bias + ReLU on the VPU.
    h = jnp.dot(x_ref[...], w1_ref[...],
                preferred_element_type=jnp.float32)            # (TM, H) f32
    h = jnp.maximum(h + b1_ref[...], 0.0)                      # ReLU
    # Dropout: identity at inference.
    # Linear2 (N=1): contract H on the MXU in A·B^T form -> (1, TM) directly,
    # which is already the lane-dense output layout (no XLU reduce/transpose).
    o = lax.dot_general(w2_ref[...], h,
                        dimension_numbers=(((1,), (1,)), ((), ())),
                        preferred_element_type=jnp.float32)     # (1, TM)
    o_ref[...] = (o + b2_ref[0]).astype(o_ref.dtype)            # + SMEM scalar


def task_head(x, w1, b1, w2, b2, *, block_rows=2048, stream_dtype=None):
    """Fused TaskHead forward. x: (B, D) -> (B, 1) float32."""
    B, D = x.shape
    H = w1.shape[1]

    # Layout plumbing in the wrapper (tiny operands).
    b1 = jnp.asarray(b1, jnp.float32).reshape(1, H)
    w2_row = jnp.asarray(w2, jnp.float32).reshape(1, H)     # (H,1)/(H,) -> (1,H)
    b2 = jnp.asarray(b2, jnp.float32).reshape(1,)           # SMEM scalar

    if stream_dtype is not None:
        # bf16 streaming of the dominant HBM operand; accumulation stays f32.
        x = x.astype(stream_dtype)
        w1 = jnp.asarray(w1, stream_dtype)
    else:
        x = jnp.asarray(x, jnp.float32)
        w1 = jnp.asarray(w1, jnp.float32)

    # Batch tile selection (no padding: Pallas handles the partial last block).
    single_block_rows = min(block_rows, 1024)
    if B <= single_block_rows:
        tm = B                                    # one full-array block
    else:
        # Large batch: 128-aligned tile, capped so the grid has >= 2 steps
        # (keeps both v7x TensorCores busy; harmless on v5e/v6e).
        tm = min(_round_up(block_rows, 128), _round_up(pl.cdiv(B, 2), 128))
    ntiles = pl.cdiv(B, tm)

    # Streamed x tile; 3-deep buffering on multi-tile grids.
    if ntiles > 1:
        x_spec = pl.BlockSpec((tm, D), lambda i: (i, 0),
                              pipeline_mode=pl.Buffered(3))
    else:
        x_spec = pl.BlockSpec((tm, D), lambda i: (i, 0))

    elt = jnp.dtype(x.dtype).itemsize
    flops = 2 * B * D * H + 2 * B * H + 2 * B
    bytes_accessed = elt * (B * D + D * H) + 4 * (2 * H + 1 + B)

    out_row = pl.pallas_call(
        task_head_kernel,
        out_shape=jax.ShapeDtypeStruct((1, B), jnp.float32),
        grid=(ntiles,),
        in_specs=[
            x_spec,                                            # streamed batch tile
            pl.BlockSpec((D, H), lambda i: (0, 0)),            # resident weights
            pl.BlockSpec((1, H), lambda i: (0, 0)),
            pl.BlockSpec((1, H), lambda i: (0, 0)),
            pl.BlockSpec(memory_space=pltpu.MemorySpace.SMEM),  # b2 scalar
        ],
        out_specs=pl.BlockSpec((1, tm), lambda i: (0, i)),     # lane-dense blocks
        compiler_params=pltpu.CompilerParams(
            dimension_semantics=("parallel",)),                 # 2 TCs on v7x
        cost_estimate=pl.CostEstimate(
            flops=flops, transcendentals=0, bytes_accessed=bytes_accessed),
    )(x, w1, b1, w2_row, b2)

    # Back to the PyTorch (B, 1) shape.
    return out_row.reshape(B, 1)


def reference(x, w1, b1, w2, b2):
    h = jnp.maximum(x @ w1 + b1.reshape(1, -1), 0.0)
    return h @ w2.reshape(-1, 1) + b2.reshape(1, 1)


if __name__ == "__main__":
    INPUT_DIM, HIDDEN_DIM = 128, 32

    key = jax.random.PRNGKey(0)
    kx, k1, k2, k3, k4, kx2, kx3 = jax.random.split(key, 7)

    # Deterministic synthetic parameters (shapes from TaskHead.__init__).
    w1 = jax.random.normal(k1, (INPUT_DIM, HIDDEN_DIM), jnp.float32) * 0.05
    b1 = jax.random.normal(k2, (HIDDEN_DIM,), jnp.float32) * 0.05
    w2 = jax.random.normal(k3, (HIDDEN_DIM, 1), jnp.float32) * 0.05
    b2 = jax.random.normal(k4, (1,), jnp.float32) * 0.05

    # Small batch: single full-array block (no alignment/padding needed).
    x = jax.random.normal(kx, (8, INPUT_DIM), jnp.float32)
    out = jax.block_until_ready(task_head(x, w1, b1, w2, b2))
    ref = reference(x, w1, b1, w2, b2)
    assert out.shape == (8, 1), out.shape
    assert jnp.allclose(out, ref, atol=1e-4, rtol=1e-4), (
        float(jnp.max(jnp.abs(out - ref))))

    # Ragged multi-tile path: partial last block (no pad copy), Buffered(3)
    # x-pipeline, SMEM b2, lane-dense (1, tm) output blocks.
    x2 = jax.random.normal(kx2, (300, INPUT_DIM), jnp.float32)
    out2 = jax.block_until_ready(task_head(x2, w1, b1, w2, b2, block_rows=128))
    ref2 = reference(x2, w1, b1, w2, b2)
    assert out2.shape == (300, 1), out2.shape
    assert jnp.allclose(out2, ref2, atol=1e-4, rtol=1e-4), (
        float(jnp.max(jnp.abs(out2 - ref2))))

    # Larger batch with default tiling: tile capped so ntiles >= 2 (megacore).
    x3 = jax.random.normal(kx3, (2500, INPUT_DIM), jnp.float32)
    out3 = jax.block_until_ready(task_head(x3, w1, b1, w2, b2))
    ref3 = reference(x3, w1, b1, w2, b2)
    assert out3.shape == (2500, 1), out3.shape
    assert jnp.allclose(out3, ref3, atol=1e-4, rtol=1e-4), (
        float(jnp.max(jnp.abs(out3 - ref3))))

    # Optional bf16 streaming path (halves streamed HBM bytes; looser parity).
    out_bf = jax.block_until_ready(
        task_head(x3, w1, b1, w2, b2, stream_dtype=jnp.bfloat16))
    assert out_bf.shape == (2500, 1), out_bf.shape
    assert jnp.allclose(out_bf, ref3, atol=3e-2, rtol=3e-2), (
        float(jnp.max(jnp.abs(out_bf - ref3))))

    print("KERNEL_OK")
</pallas_src>

<mosaic_0001>
module attributes {stable_mosaic.version = 11 : i64} {
  func.func @task_head_kernel(%arg0: i32, %arg1: memref<8x128xf32, #tpu.memory_space<vmem>>, %arg2: memref<128x32xf32, #tpu.memory_space<vmem>>, %arg3: memref<1x32xf32, #tpu.memory_space<vmem>>, %arg4: memref<1x32xf32, #tpu.memory_space<vmem>>, %arg5: memref<1xf32, #tpu.memory_space<smem>>, %arg6: memref<1x8xf32, #tpu.memory_space<vmem>>) attributes {dimension_semantics = [#tpu.dimension_semantics<parallel>], iteration_bounds = array<i64: 1>, scalar_prefetch = 0 : i64, scratch_operands = 0 : i64, tpu.core_type = #tpu.core_type<tc>, window_params = [{transform_indices = @transform_0, window_bounds = array<i64: 8, 128>}, {pipeline_mode = #tpu.pipeline_mode<synchronous>, transform_indices = @transform_1, window_bounds = array<i64: 128, 32>}, {pipeline_mode = #tpu.pipeline_mode<synchronous>, transform_indices = @transform_2, window_bounds = array<i64: 1, 32>}, {pipeline_mode = #tpu.pipeline_mode<synchronous>, transform_indices = @transform_3, window_bounds = array<i64: 1, 32>}, {transform_indices = @transform_4, window_bounds = array<i64: 1>}, {transform_indices = @transform_5, window_bounds = array<i64: 1, 8>}]} {
    %c0 = arith.constant 0 : index
    %c0_0 = arith.constant 0 : index
    %0 = vector.load %arg1[%c0, %c0_0] : memref<8x128xf32, #tpu.memory_space<vmem>>, vector<8x128xf32>
    %c0_1 = arith.constant 0 : index
    %c0_2 = arith.constant 0 : index
    %1 = vector.load %arg2[%c0_1, %c0_2] : memref<128x32xf32, #tpu.memory_space<vmem>>, vector<128x32xf32>
    %cst = arith.constant dense<0.000000e+00> : vector<8x32xf32>
    %2 = tpu.matmul %0, %1, %cst {dimension_numbers = #tpu.dot_dimension_numbers<[1], [0], [0], [1], [0, 0, 1, 1], [], []>} : vector<8x128xf32>, vector<128x32xf32>, vector<8x32xf32> -> vector<8x32xf32>
    %c0_3 = arith.constant 0 : index
    %c0_4 = arith.constant 0 : index
    %3 = vector.load %arg3[%c0_3, %c0_4] : memref<1x32xf32, #tpu.memory_space<vmem>>, vector<1x32xf32>
    %4 = vector.broadcast %3 : vector<1x32xf32> to vector<8x32xf32>
    %5 = arith.addf %2, %4 : vector<8x32xf32>
    %cst_5 = arith.constant 0.000000e+00 : f32
    %6 = vector.broadcast %cst_5 : f32 to vector<8x32xf32>
    %7 = arith.maximumf %5, %6 : vector<8x32xf32>
    %c0_6 = arith.constant 0 : index
    %c0_7 = arith.constant 0 : index
    %8 = vector.load %arg4[%c0_6, %c0_7] : memref<1x32xf32, #tpu.memory_space<vmem>>, vector<1x32xf32>
    %cst_8 = arith.constant dense<0.000000e+00> : vector<1x8xf32>
    %9 = tpu.matmul %8, %7, %cst_8 {dimension_numbers = #tpu.dot_dimension_numbers<[1], [1], [0], [0], [0, 0, 1, 0], [], []>} : vector<1x32xf32>, vector<8x32xf32>, vector<1x8xf32> -> vector<1x8xf32>
    %c0_9 = arith.constant 0 : index
    %10 = memref.load %arg5[%c0_9] : memref<1xf32, #tpu.memory_space<smem>>
    %11 = vector.broadcast %10 : f32 to vector<1x8xf32>
    %12 = arith.addf %9, %11 : vector<1x8xf32>
    %c0_10 = arith.constant 0 : index
    %c0_11 = arith.constant 0 : index
    %13 = vector.load %arg6[%c0_10, %c0_11] : memref<1x8xf32, #tpu.memory_space<vmem>>, vector<1x8xf32>
    tpu.vector_store %arg6[%c0_10, %c0_11], %12 {strides = array<i32>} : memref<1x8xf32, #tpu.memory_space<vmem>>, vector<1x8xf32>,
    return
  }
  func.func @transform_0(%arg0: i32) -> (i32, i32) {
    %c0_i32 = arith.constant 0 : i32
    %c0_i32_0 = arith.constant 0 : i32
    return %arg0, %c0_i32 : i32, i32
  }
  func.func @transform_1(%arg0: i32) -> (i32, i32) {
    %c0_i32 = arith.constant 0 : i32
    %c0_i32_0 = arith.constant 0 : i32
    %c0_i32_1 = arith.constant 0 : i32
    return %c0_i32, %c0_i32_0 : i32, i32
  }
  func.func @transform_2(%arg0: i32) -> (i32, i32) {
    %c0_i32 = arith.constant 0 : i32
    %c0_i32_0 = arith.constant 0 : i32
    %c0_i32_1 = arith.constant 0 : i32
    return %c0_i32, %c0_i32_0 : i32, i32
  }
  func.func @transform_3(%arg0: i32) -> (i32, i32) {
    %c0_i32 = arith.constant 0 : i32
    %c0_i32_0 = arith.constant 0 : i32
    %c0_i32_1 = arith.constant 0 : i32
    return %c0_i32, %c0_i32_0 : i32, i32
  }
  func.func @transform_4(%arg0: i32) -> i32 {
    %c0_i32 = arith.constant 0 : i32
    %c0_i32_0 = arith.constant 0 : i32
    return %c0_i32 : i32
  }
  func.func @transform_5(%arg0: i32) -> (i32, i32) {
    %c0_i32 = arith.constant 0 : i32
    %c0_i32_0 = arith.constant 0 : i32
    return %c0_i32, %arg0 : i32, i32
  }
}

</mosaic_0001>

<llo_original>
// kernel: tpu_custom_call.1
$region0: #{tpu_custom_call.1}
  #allocation0 [shape = 'u32[]', space=smem, size = 0x4, offset = 0x4, fixed_abs, tag = 'smem constant byte address 0x4 - core index']
  #allocation1 [shape = 'u32[144,128]{1,0:T(1,128)}', space=vmem, size = 0x12000, scoped, tag = 'internal scratch']
  #allocation2 [shape = 'f32[1]{0:T(128)S(6)}', space=smem, size = 0x200, scoped, tag = 'scoped memory for tpu_custom_call.1']
  %s0 = inlined_call_operand.vmem [shape: f32[8,128], index: 0, kind: input, shape index: {}]
  %s1 = inlined_call_operand.vmem [shape: f32[128,32], index: 1, kind: input, shape index: {}]
  %s2 = inlined_call_operand.vmem [shape: f32[1,32], index: 2, kind: input, shape index: {}]
  %s3 = inlined_call_operand.vmem [shape: f32[1,32], index: 3, kind: input, shape index: {}]
  %s4 = inlined_call_operand.<no memory space> [shape: f32[1], index: 4, kind: input, shape index: {}]
  %s5 = inlined_call_operand.hbm [shape: f32[1,8], index: 5, kind: output, shape index: {}]
  %s6 = sld [smem:[#allocation0]]
  $region30: #{tpu_custom_call.1} parent=0
    _
  %s8 = ssub.s32 1, %s6
  %s9 = scalar_select 0, %s8, %s6
  %10 = sst [smem:[#allocation2]] %s4
  $region1: #{tpu_custom_call.1} parent=0
    #allocation3 [shape = 'u8[512]{0}', space=vmem, size = 0x400, scoped, tag = 'output window, operand 0, single buffered']
    #allocation4 [shape = 's32[1]{0}', space=sflag, size = 0x4, scoped, tag = 'scoped memory for tpu_custom_call.1']
    %11 = vsyncpa [#allocation4], 0
    // Predicated region
    $region2: #{tpu_custom_call.1} parent=1 // pred_check
      _
    $region3: #{tpu_custom_call.1} parent=1 // pred_check_branch
      %13 = sbr.rel (0) target = $region5
    $region4: #{tpu_custom_call.1} parent=1 // pred_region
      _
    $region5: #{tpu_custom_call.1} parent=1 // pred_fallthru
      _
    // Predicated region
    $region6: #{tpu_custom_call.1} parent=1 // pred_check
      _
    $region7: #{tpu_custom_call.1} parent=1 // pred_check_branch
      %15 = sbr.rel (0) target = $region9
    $region8: #{tpu_custom_call.1} parent=1 // pred_region
      _
    $region9: #{tpu_custom_call.1} parent=1 // pred_fallthru
      _
    // Predicated region
    $region10: #{tpu_custom_call.1} parent=1 // pred_check
      _
    $region11: #{tpu_custom_call.1} parent=1 // pred_check_branch
      %17 = sbr.rel (0) target = $region13
    $region12: #{tpu_custom_call.1} parent=1 // pred_region
      _
    $region13: #{tpu_custom_call.1} parent=1 // pred_fallthru
      _
    // Predicated region
    $region14: #{tpu_custom_call.1} parent=1 // pred_check
      _
    $region15: #{tpu_custom_call.1} parent=1 // pred_check_branch
      %19 = sbr.rel (0) target = $region17
    $region16: #{tpu_custom_call.1} parent=1 // pred_region
      _
    $region17: #{tpu_custom_call.1} parent=1 // pred_fallthru
      _
    // Predicated region
    $region18: #{tpu_custom_call.1} parent=1 // pred_check
      _
    $region19: #{tpu_custom_call.1} parent=1 // pred_check_branch
      %21 = sbr.rel (0) target = $region21
    $region20: #{tpu_custom_call.1} parent=1 // pred_region
      _
    $region21: #{tpu_custom_call.1} parent=1 // pred_fallthru
      _
    %v22 = vld [vmem:[%s0] sm:$0xff]
    %v23 = vld [vmem:[%s1] sm:$0xff]
    %v24 = vld [vmem:[%s1 + $0x8] sm:$0xff]
    %v25 = vld [vmem:[%s1 + $0x10] sm:$0xff]
    %v26 = vld [vmem:[%s1 + $0x18] sm:$0xff]
    %v27 = vld [vmem:[%s1 + $0x20] sm:$0xff]
    %v28 = vld [vmem:[%s1 + $0x28] sm:$0xff]
    %v29 = vld [vmem:[%s1 + $0x30] sm:$0xff]
    %v30 = vld [vmem:[%s1 + $0x38] sm:$0xff]
    %v31 = vld [vmem:[%s1 + $0x40] sm:$0xff]
    %v32 = vld [vmem:[%s1 + $0x48] sm:$0xff]
    %v33 = vld [vmem:[%s1 + $0x50] sm:$0xff]
    %v34 = vld [vmem:[%s1 + $0x58] sm:$0xff]
    %v35 = vld [vmem:[%s1 + $0x60] sm:$0xff]
    %v36 = vld [vmem:[%s1 + $0x68] sm:$0xff]
    %v37 = vld [vmem:[%s1 + $0x70] sm:$0xff]
    %v38 = vld [vmem:[%s1 + $0x78] sm:$0xff]
    %v39 = vld [vmem:[%s2] sm:$0x1]
    %v41 = vlaneseq
    %v42 = vshrl.u32 %v41, 7
    %v43 = vsub.s32 0, %v42
    %v44 = vrot.slane %v39, %v43
    %46 = vmatprep.subr.mxu0 0.0
    %47 = vmatpush1.msra.mxu0 %v23
    %48 = vmatprep.subr.mxu0 0.0
    %49 = vmatpush1.msra.mxu0 %v24
    %50 = vmatprep.subr.mxu0 0.0
    %51 = vmatpush1.msra.mxu0 %v25
    %52 = vmatprep.subr.mxu0 0.0
    %53 = vmatpush1.msra.mxu0 %v26
    %54 = vmatprep.subr.mxu0 0.0
    %55 = vmatpush1.msra.mxu0 %v27
    %56 = vmatprep.subr.mxu0 0.0
    %57 = vmatpush1.msra.mxu0 %v28
    %58 = vmatprep.subr.mxu0 0.0
    %59 = vmatpush1.msra.mxu0 %v29
    %60 = vmatprep.subr.mxu0 0.0
    %61 = vmatpush1.msra.mxu0 %v30
    %62 = vmatprep.subr.mxu0 0.0
    %63 = vmatpush1.msra.mxu0 %v31
    %64 = vmatprep.subr.mxu0 0.0
    %65 = vmatpush1.msra.mxu0 %v32
    %66 = vmatprep.subr.mxu0 0.0
    %67 = vmatpush1.msra.mxu0 %v33
    %68 = vmatprep.subr.mxu0 0.0
    %69 = vmatpush1.msra.mxu0 %v34
    %70 = vmatprep.subr.mxu0 0.0
    %71 = vmatpush1.msra.mxu0 %v35
    %72 = vmatprep.subr.mxu0 0.0
    %73 = vmatpush1.msra.mxu0 %v36
    %74 = vmatprep.subr.mxu0 0.0
    %75 = vmatpush1.msra.mxu0 %v37
    %76 = vmatprep.subr.mxu0 0.0
    %77 = vmatpush1.msra.mxu0 %v38
    %78 = vmatprep.subr.mxu0 0.0
    %79 = vmatpush1.msra.mxu0 0.0
    %80 = vmatprep.subr.mxu0 0.0
    %81 = vmatpush1.msra.mxu0 0.0
    %82 = vmatprep.subr.mxu0 0.0
    %83 = vmatpush1.msra.mxu0 0.0
    %84 = vmatprep.subr.mxu0 0.0
    %85 = vmatpush1.msra.mxu0 0.0
    %86 = vmatprep.subr.mxu0 0.0
    %87 = vmatpush1.msra.mxu0 0.0
    %88 = vmatprep.subr.mxu0 0.0
    %89 = vmatpush1.msra.mxu0 0.0
    %90 = vmatprep.subr.mxu0 0.0
    %91 = vmatpush1.msra.mxu0 0.0
    %92 = vmatprep.subr.mxu0 0.0
    %93 = vmatpush1.msra.mxu0 0.0
    %94 = vmatprep.subr.mxu0 0.0
    %95 = vmatpush1.msra.mxu0 0.0
    %96 = vmatprep.subr.mxu0 0.0
    %97 = vmatpush1.msra.mxu0 0.0
    %98 = vmatprep.subr.mxu0 0.0
    %99 = vmatpush1.msra.mxu0 0.0
    %100 = vmatprep.subr.mxu0 0.0
    %101 = vmatpush1.msra.mxu0 0.0
    %102 = vmatprep.subr.mxu0 0.0
    %103 = vmatpush1.msra.mxu0 0.0
    %104 = vmatprep.subr.mxu0 0.0
    %105 = vmatpush1.msra.mxu0 0.0
    %106 = vmatprep.subr.mxu0 0.0
    %107 = vmatpush1.msra.mxu0 0.0
    %108 = vmatprep.subr.mxu0 0.0
    %109 = vmatpush1.msra.mxu0 0.0
    %110 = vmatprep.mubr.f32.mxu0 0.0
    %111 = vmatmul.mubr.f32.gmra.mrb[0].mxu0 %v22
    %v112 = vpop.f32.mrb[0].mxu0
    %v113 = vadd.f32 %v44, %v112
    %v114 = vpop.f32.mrb[0].mxu0
    %115 = vdwg.mxu0
    %v116 = vmax.f32 %v113, 0.0
    %v117 = vld [vmem:[%s3] sm:$0x1]
    %s118 = sld [smem:[#allocation2]]
    %v119 = vstv %s118
    %vm120 = vcmask 261120
    %v122 = vsel %vm120, %v117, 0
    %v125 = vsel %vm120, %v116, 0
    %127 = vmatprep.subr.mxu0 0.0
    %128 = vmatpush1.xpose.msra.mxu0 %v125
    %129 = vmatprep.subr.mxu0 0.0
    %130 = vmatpush1.xpose.msra.mxu0 0.0
    %131 = vmatprep.subr.mxu0 0.0
    %132 = vmatpush1.xpose.msra.mxu0 0.0
    %133 = vmatprep.subr.mxu0 0.0
    %134 = vmatpush1.xpose.msra.mxu0 0.0
    %135 = vmatprep.subr.mxu0 0.0
    %136 = vmatpush1.xpose.msra.mxu0 0.0
    %137 = vmatprep.subr.mxu0 0.0
    %138 = vmatpush1.xpose.msra.mxu0 0.0
    %139 = vmatprep.subr.mxu0 0.0
    %140 = vmatpush1.xpose.msra.mxu0 0.0
    %141 = vmatprep.subr.mxu0 0.0
    %142 = vmatpush1.xpose.msra.mxu0 0.0
    %143 = vmatprep.subr.mxu0 0.0
    %144 = vmatpush1.xpose.msra.mxu0 0.0
    %145 = vmatprep.subr.mxu0 0.0
    %146 = vmatpush1.xpose.msra.mxu0 0.0
    %147 = vmatprep.subr.mxu0 0.0
    %148 = vmatpush1.xpose.msra.mxu0 0.0
    %149 = vmatprep.subr.mxu0 0.0
    %150 = vmatpush1.xpose.msra.mxu0 0.0
    %151 = vmatprep.subr.mxu0 0.0
    %152 = vmatpush1.xpose.msra.mxu0 0.0
    %153 = vmatprep.subr.mxu0 0.0
    %154 = vmatpush1.xpose.msra.mxu0 0.0
    %155 = vmatprep.subr.mxu0 0.0
    %156 = vmatpush1.xpose.msra.mxu0 0.0
    %157 = vmatprep.subr.mxu0 0.0
    %158 = vmatpush1.xpose.msra.mxu0 0.0
    %159 = vmatprep.subr.mxu0 0.0
    %160 = vmatpush1.xpose.msra.mxu0 0.0
    %161 = vmatprep.subr.mxu0 0.0
    %162 = vmatpush1.xpose.msra.mxu0 0.0
    %163 = vmatprep.subr.mxu0 0.0
    %164 = vmatpush1.xpose.msra.mxu0 0.0
    %165 = vmatprep.subr.mxu0 0.0
    %166 = vmatpush1.xpose.msra.mxu0 0.0
    %167 = vmatprep.subr.mxu0 0.0
    %168 = vmatpush1.xpose.msra.mxu0 0.0
    %169 = vmatprep.subr.mxu0 0.0
    %170 = vmatpush1.xpose.msra.mxu0 0.0
    %171 = vmatprep.subr.mxu0 0.0
    %172 = vmatpush1.xpose.msra.mxu0 0.0
    %173 = vmatprep.subr.mxu0 0.0
    %174 = vmatpush1.xpose.msra.mxu0 0.0
    %175 = vmatprep.subr.mxu0 0.0
    %176 = vmatpush1.xpose.msra.mxu0 0.0
    %177 = vmatprep.subr.mxu0 0.0
    %178 = vmatpush1.xpose.msra.mxu0 0.0
    %179 = vmatprep.subr.mxu0 0.0
    %180 = vmatpush1.xpose.msra.mxu0 0.0
    %181 = vmatprep.subr.mxu0 0.0
    %182 = vmatpush1.xpose.msra.mxu0 0.0
    %183 = vmatprep.subr.mxu0 0.0
    %184 = vmatpush1.xpose.msra.mxu0 0.0
    %185 = vmatprep.subr.mxu0 0.0
    %186 = vmatpush1.xpose.msra.mxu0 0.0
    %187 = vmatprep.subr.mxu0 0.0
    %188 = vmatpush1.xpose.msra.mxu0 0.0
    %189 = vmatprep.subr.mxu0 0.0
    %190 = vmatpush1.xpose.msra.mxu0 0.0
    %191 = vmatprep.mubr.f32.mxu0 0.0
    %192 = vmatmul.mubr.f32.gmra.mrb[0].mxu0 %v122
    %v193 = vpop.f32.mrb[0].mxu0
    %v194 = vadd.f32 %v119, %v193
    %v195 = vpop.f32.mrb[0].mxu0
    %196 = vdwg.mxu0
    %vm197 = vcmask 57344
    %198 = vst.msk [vmem:[#allocation3] sm:$0x1] %vm197, %v194
    // Predicated region
    $region22: #{tpu_custom_call.1} parent=1 // pred_check
      _
    $region23: #{tpu_custom_call.1} parent=1 // pred_check_branch
      %200 = sbr.rel (0) target = $region25
    $region24: #{tpu_custom_call.1} parent=1 // pred_region
      %s202 = ssub.s32 16, 16
      %203 = vsyncadd [#allocation4], %s202
      %s205 = sshll.u32 [#allocation3], 4
      %s206 = int_to_ptr.vmem [resolvable:$true] %s205
      %208 = dma.vmem_to_hbm [thread:$0]  %s206, 16, %s5, [#allocation4]
    $region25: #{tpu_custom_call.1} parent=1 // pred_fallthru
      _
    // Predicated region
    $region26: #{tpu_custom_call.1} parent=1 // pred_check
      _
    $region27: #{tpu_custom_call.1} parent=1 // pred_check_branch
      %210 = sbr.rel (0) target = $region29
    $region28: #{tpu_custom_call.1} parent=1 // pred_region
      %211 = dma.done [#allocation4], 16
    $region29: #{tpu_custom_call.1} parent=1 // pred_fallthru
      _
    %212 = vsyncpa [#allocation4], 1

</llo_original>
